<compile_context>
chip_gen: v6e
topology: v6e:2x2x1
jax: 0.10.0
libtpu: 0.0.40
codegen_flags: <defaults>
</compile_context>

<pallas_src>
import jax
import jax.numpy as jnp
from jax.experimental import pallas as pl
from jax.experimental.pallas import tpu as pltpu


# ----------------------------------------------------------------------------
# Kernel
# ----------------------------------------------------------------------------
def _modrelu_kernel(bias_ref, re_ref, im_ref, ore_ref, oim_ref):
    """re/im/ore/oim: (1, TR, C) float32 blocks.  bias: (1, 1, C) float32."""
    re = re_ref[...]
    im = im_ref[...]
    b = bias_ref[...]

    sumsq = re * re + im * im
    inv_mag = jax.lax.rsqrt(sumsq)                  # EUP; inf at x == 0, fixed below
    scale = jnp.maximum(1.0 + b * inv_mag, 0.0)     # relu(|x| + b) / |x|
    nonzero = sumsq > 0.0
    # torch parity at x == 0: angle(0) == 0  ->  output (relu(b), 0)
    zero_re = jnp.maximum(b, 0.0)                   # (1, 1, C), sublane-broadcasts
    ore_ref[...] = jnp.where(nonzero, re * scale, zero_re)
    oim_ref[...] = jnp.where(nonzero, im * scale, 0.0)


# ----------------------------------------------------------------------------
# Layout / tiling heuristics
# ----------------------------------------------------------------------------
_TARGET_BLOCK_ELEMS = (2 * 1024 * 1024) // 4   # ~2 MiB of f32 per plane block
_VMEM_LIMIT_BYTES = 40 * 1024 * 1024           # fits v5e/v6e/v7x scoped VMEM


def _fold_factor(r_unit, c_unit, max_lanes=2048):
    """Smallest divisor f of r_unit making f*c_unit a multiple of 128 (lane-dense
    stores); otherwise the largest divisor keeping f*c_unit <= max_lanes."""
    if c_unit % 128 == 0:
        return 1
    best, f = 1, 1
    while f * c_unit <= max_lanes and f <= r_unit:
        if r_unit % f == 0:
            if (f * c_unit) % 128 == 0:
                return f
            best = f
        f += 1
    return best


def _pick_tr(r, c, g):
    """Rows per block: ~_TARGET_BLOCK_ELEMS per plane block, multiple of 8 (or
    the full row count); keep >= 2 row blocks when the group axis is 1 so the
    grid can shard across both v7x TensorCores."""
    tr = min(r, max(1, _TARGET_BLOCK_ELEMS // c))
    if g == 1 and r >= 16:
        tr = min(tr, (r + 1) // 2)
    if tr >= r:
        return r
    if tr >= 8:
        return (tr // 8) * 8
    return 8 if r > 8 else r


# ----------------------------------------------------------------------------
# Public wrapper (matches the PyTorch module's forward semantics).
# Deliberately un-jitted: inline it into the caller's jit so the complex<->f32
# conversions fuse with surrounding ops.
# ----------------------------------------------------------------------------
def modrelu(x, bias):
    """ModReLU forward.  x: complex [B, S, D] (bias [D], num_heads == 1) or
    [B, H, S, Dh] (bias [H, 1, Dh], num_heads > 1)."""
    orig_shape = x.shape
    re = jnp.real(x).astype(jnp.float32)
    im = jnp.imag(x).astype(jnp.float32)

    if x.ndim == 4:
        bsz, h, s, dh = x.shape
        assert bias.shape == (h, 1, dh)
        f = _fold_factor(s, dh)
        g, r, c = bsz * h, s // f, f * dh
        bias3 = jnp.tile(bias.astype(jnp.float32).reshape(h, dh), (1, f)).reshape(h, 1, c)
        gb = h
    elif x.ndim == 3:
        bsz, s, d = x.shape
        assert bias.shape == (d,)
        f = _fold_factor(bsz * s, d)
        g, r, c = 1, (bsz * s) // f, f * d
        bias3 = jnp.tile(bias.astype(jnp.float32), f).reshape(1, 1, c)
        gb = 1
    else:
        raise ValueError("x must be 3D [B,S,D] or 4D [B,H,S,Dh]")

    re3 = re.reshape(g, r, c)
    im3 = im.reshape(g, r, c)

    tr = _pick_tr(r, c, g)
    grid = (g, pl.cdiv(r, tr))

    if gb == 1:
        bias_map = lambda gi, ri: (0, 0, 0)                 # VMEM-resident, one fetch
    else:
        bias_map = lambda gi, ri: (gi % gb, 0, 0)           # re-fetched on head change only
    x_map = lambda gi, ri: (gi, ri, 0)

    plane = jax.ShapeDtypeStruct((g, r, c), jnp.float32)
    out_re, out_im = pl.pallas_call(
        _modrelu_kernel,
        out_shape=(plane, plane),
        grid_spec=pltpu.PrefetchScalarGridSpec(
            num_scalar_prefetch=0,
            grid=grid,
            in_specs=[
                pl.BlockSpec((1, 1, c), bias_map),          # tiny per-head bias row
                pl.BlockSpec((1, tr, c), x_map),            # real plane
                pl.BlockSpec((1, tr, c), x_map),            # imag plane
            ],
            out_specs=[
                pl.BlockSpec((1, tr, c), x_map),
                pl.BlockSpec((1, tr, c), x_map),
            ],
        ),
        compiler_params=pltpu.CompilerParams(
            dimension_semantics=("parallel", "parallel"),
            vmem_limit_bytes=_VMEM_LIMIT_BYTES,
            allow_input_fusion=[False, True, True],
        ),
        input_output_aliases={1: 0, 2: 1},
    )(bias3, re3, im3)

    return jax.lax.complex(out_re.reshape(orig_shape), out_im.reshape(orig_shape))


def _modrelu_ref(x, bias):
    """Pure-JAX reference mirroring the PyTorch forward."""
    mag = jnp.abs(x)
    phase = jnp.angle(x)
    if x.ndim == 4:
        thr = jax.nn.relu(mag + bias)                       # [H,1,Dh] over [B,H,S,Dh]
    else:
        thr = jax.nn.relu(mag + bias[None, None, :])
    return jax.lax.complex(thr * jnp.cos(phase), thr * jnp.sin(phase))


if __name__ == "__main__":
    key = jax.random.PRNGKey(0)
    fwd = jax.jit(modrelu)

    # --- 3D case: dim=32, num_heads=1 ---
    B, S, D = 2, 8, 32
    k1, k2, k3, key = jax.random.split(key, 4)
    x3 = jax.lax.complex(jax.random.normal(k1, (B, S, D), dtype=jnp.float32),
                         jax.random.normal(k2, (B, S, D), dtype=jnp.float32))
    x3 = x3.at[0, 0, 0].set(0)            # exercise the exact-zero path
    # Module __init__ uses zeros; use a deterministic non-zero bias to exercise the threshold.
    bias3 = 0.2 * jax.random.normal(k3, (D,), dtype=jnp.float32)

    out3 = jax.block_until_ready(fwd(x3, bias3))
    ref3 = _modrelu_ref(x3, bias3)
    assert out3.shape == x3.shape and out3.dtype == jnp.complex64
    assert jnp.allclose(out3, ref3, atol=1e-5, rtol=1e-5)

    # --- 4D case: dim=32, num_heads=4 -> head_dim=8 ---
    H, Dh = 4, 8
    k1, k2, k3, key = jax.random.split(key, 4)
    x4 = jax.lax.complex(jax.random.normal(k1, (B, H, S, Dh), dtype=jnp.float32),
                         jax.random.normal(k2, (B, H, S, Dh), dtype=jnp.float32))
    x4 = x4.at[1, 2, 3, 4].set(0)
    bias4 = 0.2 * jax.random.normal(k3, (H, 1, Dh), dtype=jnp.float32)

    out4 = jax.block_until_ready(fwd(x4, bias4))
    ref4 = _modrelu_ref(x4, bias4)
    assert out4.shape == x4.shape and out4.dtype == jnp.complex64
    assert jnp.allclose(out4, ref4, atol=1e-5, rtol=1e-5)

    print("KERNEL_OK")
</pallas_src>

<mosaic_0001>
module attributes {stable_mosaic.version = 11 : i64} {
  func.func @_modrelu_kernel(%arg0: i32, %arg1: i32, %arg2: memref<1x1x128xf32, #tpu.memory_space<vmem>>, %arg3: memref<1x4x128xf32, #tpu.memory_space<vmem>>, %arg4: memref<1x4x128xf32, #tpu.memory_space<vmem>>, %arg5: memref<1x4x128xf32, #tpu.memory_space<vmem>>, %arg6: memref<1x4x128xf32, #tpu.memory_space<vmem>>) attributes {dimension_semantics = [#tpu.dimension_semantics<parallel>, #tpu.dimension_semantics<parallel>], iteration_bounds = array<i64: 1, 1>, scalar_prefetch = 0 : i64, scratch_operands = 0 : i64, tpu.core_type = #tpu.core_type<tc>, window_params = [{pipeline_mode = #tpu.pipeline_mode<synchronous>, transform_indices = @transform_0, window_bounds = array<i64: 1, 1, 128>}, {transform_indices = @transform_1, window_bounds = array<i64: 1, 4, 128>}, {transform_indices = @transform_2, window_bounds = array<i64: 1, 4, 128>}, {transform_indices = @transform_3, window_bounds = array<i64: 1, 4, 128>}, {transform_indices = @transform_4, window_bounds = array<i64: 1, 4, 128>}]} {
    %c0 = arith.constant 0 : index
    %c0_0 = arith.constant 0 : index
    %c0_1 = arith.constant 0 : index
    %0 = vector.load %arg3[%c0, %c0_0, %c0_1] : memref<1x4x128xf32, #tpu.memory_space<vmem>>, vector<1x4x128xf32>
    %c0_2 = arith.constant 0 : index
    %c0_3 = arith.constant 0 : index
    %c0_4 = arith.constant 0 : index
    %1 = vector.load %arg4[%c0_2, %c0_3, %c0_4] : memref<1x4x128xf32, #tpu.memory_space<vmem>>, vector<1x4x128xf32>
    %c0_5 = arith.constant 0 : index
    %c0_6 = arith.constant 0 : index
    %c0_7 = arith.constant 0 : index
    %2 = vector.load %arg2[%c0_5, %c0_6, %c0_7] : memref<1x1x128xf32, #tpu.memory_space<vmem>>, vector<1x1x128xf32>
    %3 = arith.mulf %0, %0 : vector<1x4x128xf32>
    %4 = arith.mulf %1, %1 : vector<1x4x128xf32>
    %5 = arith.addf %3, %4 : vector<1x4x128xf32>
    %6 = math.rsqrt %5 : vector<1x4x128xf32>
    %7 = vector.broadcast %2 : vector<1x1x128xf32> to vector<1x4x128xf32>
    %8 = arith.mulf %7, %6 : vector<1x4x128xf32>
    %cst = arith.constant 1.000000e+00 : f32
    %9 = vector.broadcast %cst : f32 to vector<1x4x128xf32>
    %10 = arith.addf %9, %8 : vector<1x4x128xf32>
    %cst_8 = arith.constant 0.000000e+00 : f32
    %11 = vector.broadcast %cst_8 : f32 to vector<1x4x128xf32>
    %12 = arith.maximumf %10, %11 : vector<1x4x128xf32>
    %cst_9 = arith.constant 0.000000e+00 : f32
    %13 = vector.broadcast %cst_9 : f32 to vector<1x4x128xf32>
    %14 = arith.cmpf ogt, %5, %13 : vector<1x4x128xf32>
    %cst_10 = arith.constant 0.000000e+00 : f32
    %15 = vector.broadcast %cst_10 : f32 to vector<1x1x128xf32>
    %16 = arith.maximumf %2, %15 : vector<1x1x128xf32>
    %17 = arith.mulf %0, %12 : vector<1x4x128xf32>
    %18 = vector.shape_cast %16 : vector<1x1x128xf32> to vector<1x1x128xf32>
    %19 = vector.broadcast %18 : vector<1x1x128xf32> to vector<1x4x128xf32>
    %20 = arith.select %14, %17, %19 : vector<1x4x128xi1>, vector<1x4x128xf32>
    %c0_11 = arith.constant 0 : index
    %c0_12 = arith.constant 0 : index
    %c0_13 = arith.constant 0 : index
    %21 = vector.load %arg5[%c0_11, %c0_12, %c0_13] : memref<1x4x128xf32, #tpu.memory_space<vmem>>, vector<1x4x128xf32>
    tpu.vector_store %arg5[%c0_11, %c0_12, %c0_13], %20 {strides = array<i32>} : memref<1x4x128xf32, #tpu.memory_space<vmem>>, vector<1x4x128xf32>,
    %22 = arith.mulf %1, %12 : vector<1x4x128xf32>
    %cst_14 = arith.constant 0.000000e+00 : f32
    %23 = vector.broadcast %cst_14 : f32 to vector<1x4x128xf32>
    %24 = arith.select %14, %22, %23 : vector<1x4x128xi1>, vector<1x4x128xf32>
    %c0_15 = arith.constant 0 : index
    %c0_16 = arith.constant 0 : index
    %c0_17 = arith.constant 0 : index
    %25 = vector.load %arg6[%c0_15, %c0_16, %c0_17] : memref<1x4x128xf32, #tpu.memory_space<vmem>>, vector<1x4x128xf32>
    tpu.vector_store %arg6[%c0_15, %c0_16, %c0_17], %24 {strides = array<i32>} : memref<1x4x128xf32, #tpu.memory_space<vmem>>, vector<1x4x128xf32>,
    return
  }
  func.func @transform_0(%arg0: i32, %arg1: i32) -> (i32, i32, i32) {
    %c0_i32 = arith.constant 0 : i32
    %c0_i32_0 = arith.constant 0 : i32
    %c0_i32_1 = arith.constant 0 : i32
    %c0_i32_2 = arith.constant 0 : i32
    return %c0_i32, %c0_i32_0, %c0_i32_1 : i32, i32, i32
  }
  func.func @transform_1(%arg0: i32, %arg1: i32) -> (i32, i32, i32) {
    %c0_i32 = arith.constant 0 : i32
    %c0_i32_0 = arith.constant 0 : i32
    return %arg0, %arg1, %c0_i32 : i32, i32, i32
  }
  func.func @transform_2(%arg0: i32, %arg1: i32) -> (i32, i32, i32) {
    %c0_i32 = arith.constant 0 : i32
    %c0_i32_0 = arith.constant 0 : i32
    return %arg0, %arg1, %c0_i32 : i32, i32, i32
  }
  func.func @transform_3(%arg0: i32, %arg1: i32) -> (i32, i32, i32) {
    %c0_i32 = arith.constant 0 : i32
    %c0_i32_0 = arith.constant 0 : i32
    return %arg0, %arg1, %c0_i32 : i32, i32, i32
  }
  func.func @transform_4(%arg0: i32, %arg1: i32) -> (i32, i32, i32) {
    %c0_i32 = arith.constant 0 : i32
    %c0_i32_0 = arith.constant 0 : i32
    return %arg0, %arg1, %c0_i32 : i32, i32, i32
  }
}

</mosaic_0001>

<llo_original>
// kernel: custom-call.1
$region0: #{custom-call.1}
  %s0 = inlined_call_operand.hbm [shape: c64[2,8,32], index: 0, kind: input, shape index: {}]
  %s1 = inlined_call_operand.vmem [shape: f32[2,8,32], index: 1, kind: output, shape index: {}]
  %s2 = scalar_lea.hbm %s0, 256
  $region1: #{custom-call.1} parent=0
    #allocation0 [shape = 's32[1]{0}', space=sflag, size = 0x4, scoped, tag = 'scoped memory for custom-call.1']
    %3 = vsyncpa [#allocation0], 0
    %s4 = sshll.u32 %s1, 4
    %s5 = int_to_ptr.vmem [resolvable:$true] %s4
    %7 = dma.hbm_to_vmem [thread:$0]  %s2, 256, %s5, [#allocation0]
    %8 = dma.done [#allocation0], 256
    %9 = vsyncpa [#allocation0], 1

// kernel: tile.9
$region0: #{tile.9}
  %s0 = inlined_call_operand.vmem [shape: f32[4,32], index: 0, kind: input, shape index: {}]
  %s1 = inlined_call_operand.vmem [shape: f32[1,1,128], index: 1, kind: output, shape index: {}]
  $region1: #{tile.9} parent=0
    #allocation0 [shape = 'u8[4096]{0}', space=vmem, size = 0x1000, scoped, tag = 'scoped mem for output reshape']
    #allocation1 [shape = 'u8[4096]{0}', space=vmem, size = 0x1000, scoped, tag = 'scoped mem for input reshape']
    %s3 = sshll.u32 1, 4
    %s4 = ssub.s32 %s3, 1
    %v5 = vld [vmem:[%s0] sm:%s4]
    %6 = vst [vmem:[#allocation1] sm:%s4] %v5
    %v7 = vld [vmem:[#allocation1] sm:$0x1]
    %vm8 = vcmask 261120
    %9 = vst.msk [vmem:[#allocation0] sm:$0x1] %vm8, %v7
    %s10 = scalar_lea.vmem [#allocation1], 3
    %v11 = vld [vmem:[%s10] sm:$0x1]
    %12 = vrot.lane.b32.xlu0 %v11, 96
    %v13 = vpop.permute.xlu0 %12
    %vm14 = vcmask 1048320
    %15 = vst.msk [vmem:[#allocation0] sm:$0x1] %vm14, %v13
    %s16 = scalar_lea.vmem [#allocation1], 2
    %v17 = vld [vmem:[%s16] sm:$0x1]
    %18 = vrot.lane.b32.xlu0 %v17, 64
    %v19 = vpop.permute.xlu0 %18
    %vm20 = vcmask 785920
    %21 = vst.msk [vmem:[#allocation0] sm:$0x1] %vm20, %v19
    %s22 = scalar_lea.vmem [#allocation1], 1
    %v23 = vld [vmem:[%s22] sm:$0x1]
    %24 = vrot.lane.b32.xlu0 %v23, 32
    %v25 = vpop.permute.xlu0 %24
    %vm26 = vcmask 523520
    %27 = vst.msk [vmem:[#allocation0] sm:$0x1] %vm26, %v25
    %s29 = sshll.u32 1, 1
    %s30 = ssub.s32 %s29, 1
    %v32 = vld [vmem:[#allocation0] sm:%s30]
    %s33 = sshll.u32 1, 1
    %s34 = ssub.s32 %s33, 1
    %35 = vst [vmem:[%s1] sm:%s34] %v32

// kernel: tile.8
$region0: #{tile.8}
  #allocation2 [shape = 's32[1]{0}', space=sflag, size = 0x4, scoped, tag = 'scoped memory for tile.8']
  %s0 = inlined_call_operand.hbm [shape: f32[32], index: 0, kind: input, shape index: {}]
  %s1 = inlined_call_operand.vmem [shape: f32[4,32], index: 1, kind: output, shape index: {}]
  $region1: #{tile.8} parent=0
    #allocation0 [shape = 'u8[512]{0}', space=vmem, size = 0x400, scoped, tag = 'operand span for operand 0']
    #allocation1 [shape = 's32[1]{0}', space=sflag, size = 0x4, scoped, tag = 'scoped memory for tile.8']
    %2 = vsyncpa [#allocation1], 0
    // Predicated region
    $region2: #{tile.8} parent=1 // pred_check
      _
    $region3: #{tile.8} parent=1 // pred_check_branch
      %4 = sbr.rel (0) target = $region5
    $region4: #{tile.8} parent=1 // pred_region
      %s6 = ssub.s32 16, 16
      %7 = vsyncadd [#allocation1], %s6
      %s9 = sshll.u32 [#allocation0], 4
      %s10 = int_to_ptr.vmem [resolvable:$true] %s9
      %12 = dma.hbm_to_vmem [thread:$0]  %s0, 16, %s10, [#allocation1]
    $region5: #{tile.8} parent=1 // pred_fallthru
      _
    // Predicated region
    $region6: #{tile.8} parent=1 // pred_check
      _
    $region7: #{tile.8} parent=1 // pred_check_branch
      %14 = sbr.rel (0) target = $region9
    $region8: #{tile.8} parent=1 // pred_region
      %15 = dma.done [#allocation1], 16
    $region9: #{tile.8} parent=1 // pred_fallthru
      _
    %v16 = vld [vmem:[#allocation0] ss:$0 sm:$0xff]
    %17 = vst [vmem:[%s1] sm:$0xf] %v16
    %18 = vsyncpa [#allocation1], 1

// kernel: custom-call.2
$region0: #{custom-call.2}
  %s0 = inlined_call_operand.vmem [shape: f32[2,8,32], index: 0, kind: input, shape index: {}]
  %s1 = inlined_call_operand.vmem [shape: f32[2,8,32], index: 1, kind: input, shape index: {}]
  %s2 = inlined_call_operand.hbm [shape: c64[2,8,32], index: 2, kind: output, shape index: {}]
  %s3 = scalar_lea.hbm %s2, 256
  $region1: #{custom-call.2} parent=0
    #allocation0 [shape = 's32[1]{0}', space=sflag, size = 0x4, scoped, tag = 'scoped memory for custom-call.2']
    %4 = vsyncpa [#allocation0], 0
    %s5 = sshll.u32 %s0, 4
    %s6 = int_to_ptr.vmem [resolvable:$true] %s5
    %8 = dma.vmem_to_hbm [thread:$0]  %s6, 256, %s2, [#allocation0]
    %9 = dma.done [#allocation0], 256
    %10 = vsyncpa [#allocation0], 1
  $region2: #{custom-call.2} parent=0
    #allocation1 [shape = 's32[1]{0}', space=sflag, size = 0x4, scoped, tag = 'scoped memory for custom-call.2']
    %11 = vsyncpa [#allocation1], 0
    %s12 = sshll.u32 %s1, 4
    %s13 = int_to_ptr.vmem [resolvable:$true] %s12
    %15 = dma.vmem_to_hbm [thread:$0]  %s13, 256, %s3, [#allocation1]
    %16 = dma.done [#allocation1], 256
    %17 = vsyncpa [#allocation1], 1

// kernel: custom-call
$region0: #{custom-call}
  %s0 = inlined_call_operand.hbm [shape: c64[2,8,32], index: 0, kind: input, shape index: {}]
  %s1 = inlined_call_operand.vmem [shape: f32[2,8,32], index: 1, kind: output, shape index: {}]
  $region1: #{custom-call} parent=0
    #allocation0 [shape = 's32[1]{0}', space=sflag, size = 0x4, scoped, tag = 'scoped memory for custom-call']
    %2 = vsyncpa [#allocation0], 0
    %s3 = sshll.u32 %s1, 4
    %s4 = int_to_ptr.vmem [resolvable:$true] %s3
    %6 = dma.hbm_to_vmem [thread:$0]  %s0, 256, %s4, [#allocation0]
    %7 = dma.done [#allocation0], 256
    %8 = vsyncpa [#allocation0], 1

// kernel: modrelu.1
$region0: #{modrelu.1}
  #allocation0 [shape = 'u32[]', space=smem, size = 0x4, offset = 0x4, fixed_abs, tag = 'smem constant byte address 0x4 - core index']
  #allocation1 [shape = 'u32[144,128]{1,0:T(1,128)}', space=vmem, size = 0x12000, scoped, tag = 'internal scratch']
  %s0 = inlined_call_operand.vmem [shape: f32[1,1,128], index: 0, kind: input, shape index: {}]
  %s1 = inlined_call_operand.vmem [shape: f32[1,4,128], index: 1, kind: input, shape index: {}, may-alias: {1,3}]
  %s2 = inlined_call_operand.vmem [shape: f32[1,4,128], index: 2, kind: input, shape index: {}, may-alias: {2,4}]
  %s3 = inlined_call_operand.vmem [shape: f32[1,4,128], index: 3, kind: output, shape index: {0}, may-alias: {1,3}]
  %s4 = inlined_call_operand.vmem [shape: f32[1,4,128], index: 4, kind: output, shape index: {1}, may-alias: {2,4}]
  %5 = xla_tuple %s3, %s4
  %s6 = sld [smem:[#allocation0]]
  $region30: #{modrelu.1} parent=0
    _
  %s8 = ssub.s32 1, %s6
  %s9 = scalar_select 0, %s8, %s6
  // Predicated region
  $region2: #{modrelu.1} parent=0 // pred_check
    _
  $region3: #{modrelu.1} parent=0 // pred_check_branch
    %11 = sbr.rel (0) target = $region5
  $region4: #{modrelu.1} parent=0 // pred_region
    _
  $region5: #{modrelu.1} parent=0 // pred_fallthru
    _
  // Predicated region
  $region6: #{modrelu.1} parent=0 // pred_check
    _
  $region7: #{modrelu.1} parent=0 // pred_check_branch
    %13 = sbr.rel (0) target = $region9
  $region8: #{modrelu.1} parent=0 // pred_region
    _
  $region9: #{modrelu.1} parent=0 // pred_fallthru
    _
  // Predicated region
  $region10: #{modrelu.1} parent=0 // pred_check
    _
  $region11: #{modrelu.1} parent=0 // pred_check_branch
    %15 = sbr.rel (0) target = $region13
  $region12: #{modrelu.1} parent=0 // pred_region
    _
  $region13: #{modrelu.1} parent=0 // pred_fallthru
    _
  %v16 = vld [vmem:[%s1] sm:$0xf]
  %v17 = vld [vmem:[%s2] sm:$0xf]
  %v18 = vld [vmem:[%s0] sm:$0x1]
  %v19 = vmul.f32 %v16, %v16
  %v20 = vmul.f32 %v17, %v17
  %v21 = vadd.f32 %v19, %v20
  %v22 = vrsqrt.pop %v21
  %v24 = vlaneseq
  %v25 = vshrl.u32 %v24, 7
  %v26 = vsub.s32 0, %v25
  %v27 = vrot.slane %v18, %v26
  %v29 = vmul.f32 %v27, %v22
  %v30 = vadd.f32 %v29, 1.0
  %v31 = vmax.f32 %v30, 0.0
  %vm32 = vcmp.gt.f32.partialorder %v21, 0.0
  %v33 = vmax.f32 %v18, 0.0
  %v34 = vmul.f32 %v16, %v31
  %v36 = vlaneseq
  %v37 = vshrl.u32 %v36, 7
  %v38 = vsub.s32 0, %v37
  %v39 = vrot.slane %v33, %v38
  %v41 = vsel %vm32, %v34, %v39
  %42 = vst [vmem:[%s3] sm:$0xf] %v41
  %v43 = vmul.f32 %v17, %v31
  %v44 = vsel %vm32, %v43, 0.0
  %45 = vst [vmem:[%s4] sm:$0xf] %v44
  // Predicated region
  $region14: #{modrelu.1} parent=0 // pred_check
    _
  $region15: #{modrelu.1} parent=0 // pred_check_branch
    %47 = sbr.rel (0) target = $region17
  $region16: #{modrelu.1} parent=0 // pred_region
    _
  $region17: #{modrelu.1} parent=0 // pred_fallthru
    _
  // Predicated region
  $region18: #{modrelu.1} parent=0 // pred_check
    _
  $region19: #{modrelu.1} parent=0 // pred_check_branch
    %49 = sbr.rel (0) target = $region21
  $region20: #{modrelu.1} parent=0 // pred_region
    _
  $region21: #{modrelu.1} parent=0 // pred_fallthru
    _
  // Predicated region
  $region22: #{modrelu.1} parent=0 // pred_check
    _
  $region23: #{modrelu.1} parent=0 // pred_check_branch
    %51 = sbr.rel (0) target = $region25
  $region24: #{modrelu.1} parent=0 // pred_region
    _
  $region25: #{modrelu.1} parent=0 // pred_fallthru
    _
  // Predicated region
  $region26: #{modrelu.1} parent=0 // pred_check
    _
  $region27: #{modrelu.1} parent=0 // pred_check_branch
    %53 = sbr.rel (0) target = $region29
  $region28: #{modrelu.1} parent=0 // pred_region
    _
  $region29: #{modrelu.1} parent=0 // pred_fallthru
    _

</llo_original>
